<compile_context>
chip_gen: v5e
topology: v5e:2x2
jax: 0.10.0
libtpu: 0.0.40
codegen_flags: <defaults>
</compile_context>

<pallas_src>
import jax
import jax.numpy as jnp
from jax.experimental import pallas as pl
from jax.experimental.pallas import tpu as pltpu


MAX_TILE_B = 8192   # rows per grid step; footprint is a few MiB double-buffered -> fits every gen
_ROW_ALIGN = 16     # bf16 min sublane tile; also valid for f32


def _round_up(n, m):
    return ((n + m - 1) // m) * m


def ann_kernel(x_ref,
               w1_ref, b1_ref,
               w2_ref, b2_ref,
               w3_ref, b3_ref,
               w4_ref, b4_ref,
               w5_ref, b5_ref,
               o_ref):
    """One (TILE_B, 67) batch tile -> (TILE_B, 1) output tile, all five layers fused."""
    cdt = w1_ref.dtype                       # MXU input dtype (bf16 default / f32)

    h = x_ref[...]                           # (TILE_B, 67), already in cdt

    # fc1..fc4: MXU matmuls with f32 accumulation, f32 bias add + ReLU on the VPU.
    h = jnp.dot(h, w1_ref[...], preferred_element_type=jnp.float32) + b1_ref[...]
    h = jnp.maximum(h, 0.0)

    h = jnp.dot(h.astype(cdt), w2_ref[...],
                preferred_element_type=jnp.float32) + b2_ref[...]
    h = jnp.maximum(h, 0.0)

    h = jnp.dot(h.astype(cdt), w3_ref[...],
                preferred_element_type=jnp.float32) + b3_ref[...]
    h = jnp.maximum(h, 0.0)

    h = jnp.dot(h.astype(cdt), w4_ref[...],
                preferred_element_type=jnp.float32) + b4_ref[...]
    h = jnp.maximum(h, 0.0)

    # fc5 (32 -> 1): VPU multiply + XLU lane reduction instead of a 1-column MXU matmul —
    # the MXU slot is the saturated resource; the cross-lane reduce rides otherwise-idle XLU slots.
    w5_row = w5_ref[...].astype(jnp.float32)                  # (1, 32)
    y = jnp.sum(h * w5_row, axis=-1, keepdims=True) + b5_ref[...]

    o_ref[...] = y.astype(o_ref.dtype)                        # (TILE_B, 1)


def prepare_params(params, *, dtype=jnp.bfloat16):
    """One-time layout / cast of PyTorch-style params (call once, reuse across forwards).

    params: dict name -> (weight (out, in), bias (out,)).
    Returns a flat tuple (w1, b1, ..., w5, b5): weights transposed to (in, out) in `dtype`
    (bf16 default: native MXU input, halves HBM bytes); biases stay f32 as (1, out) rows.
    """
    flat = []
    for name in ("fc1", "fc2", "fc3", "fc4"):
        w, b = params[name]
        flat.append(jnp.asarray(w, jnp.float32).T.astype(dtype))   # (in, out)
        flat.append(jnp.asarray(b, jnp.float32)[None, :])          # (1, out), f32
    w5, b5 = params["fc5"]
    flat.append(jnp.asarray(w5, jnp.float32).astype(dtype))        # (1, 32) row (kept un-transposed)
    flat.append(jnp.asarray(b5, jnp.float32)[None, :])             # (1, 1), f32
    return tuple(flat)


def ann_forward(x, prepared, *, tile_b=None):
    """x: (B, 67). prepared: output of prepare_params(). Returns (B, 1) f32.

    bf16-prepared params stream x/weights as bf16 (f32 accumulation): expect ~1e-2 relative error.
    """
    x = jnp.asarray(x)
    B, fin = x.shape
    stream_dtype = prepared[0].dtype

    if tile_b is None:
        # Target >= 2 grid steps so v7x's two TensorCores both get work ("parallel" batch axis),
        # capped at MAX_TILE_B to amortize the ~0.35 us/step grid overhead on large batches.
        tile_b = min(MAX_TILE_B, _round_up(max(pl.cdiv(B, 2), _ROW_ALIGN), _ROW_ALIGN))
    tile_b = min(MAX_TILE_B, max(_ROW_ALIGN, _round_up(tile_b, _ROW_ALIGN)))

    b_pad = _round_up(B, tile_b)
    x_in = x.astype(stream_dtype)
    if b_pad != B:
        x_in = jnp.pad(x_in, ((0, b_pad - B), (0, 0)))

    # x / out stream per grid step; weights & biases pinned VMEM-resident via constant index maps
    # (DMA'd once, reused by every tile).
    in_specs = [pl.BlockSpec((tile_b, fin), lambda i: (i, 0))]
    for p in prepared:
        in_specs.append(pl.BlockSpec(p.shape, lambda i: (0, 0)))

    # Explicit VMEM budget: double-buffered x & out blocks plus a handful of (tile_b, 128) f32
    # activation temps.  Set explicitly so big tiles also compile under v5e's 16 MiB default
    # scoped-VMEM limit, capped at 56 MiB to stay inside v7x's 64 MiB physical VMEM.
    vmem_bytes = 12 * tile_b * 128 * 4 + (4 << 20)
    vmem_bytes = int(min(max(vmem_bytes, 16 << 20), 56 << 20))

    out = pl.pallas_call(
        ann_kernel,
        out_shape=jax.ShapeDtypeStruct((b_pad, 1), jnp.float32),
        grid=(b_pad // tile_b,),
        in_specs=in_specs,
        out_specs=pl.BlockSpec((tile_b, 1), lambda i: (i, 0)),
        compiler_params=pltpu.CompilerParams(
            dimension_semantics=("parallel",),          # v7x: shard the batch over 2 TCs
            vmem_limit_bytes=vmem_bytes),
    )(x_in, *prepared)

    return out[:B]


def init_params(key):
    """Deterministic init matching nn.Linear shapes: weight (out, in), bias (out,)."""
    dims = {"fc1": (64, 67), "fc2": (64, 64), "fc3": (64, 64),
            "fc4": (32, 64), "fc5": (1, 32)}
    params = {}
    for name, (out_d, in_d) in dims.items():
        key, kw, kb = jax.random.split(key, 3)
        bound = 1.0 / jnp.sqrt(in_d)
        w = jax.random.uniform(kw, (out_d, in_d), jnp.float32, -bound, bound)
        b = jax.random.uniform(kb, (out_d,), jnp.float32, -bound, bound)
        params[name] = (w, b)
    return params


def ann_reference(x, params):
    """Pure-JAX reference replicating the (corrected) PyTorch forward."""
    h = x
    for name in ("fc1", "fc2", "fc3", "fc4"):
        w, b = params[name]
        h = jnp.maximum(h @ w.T + b, 0.0)
    w, b = params["fc5"]
    return h @ w.T + b


if __name__ == "__main__":
    key = jax.random.PRNGKey(0)
    key, kx1, kx2 = jax.random.split(key, 3)
    params = init_params(key)

    prep_bf16 = prepare_params(params)                    # default bf16 streaming path
    prep_f32 = prepare_params(params, dtype=jnp.float32)  # exact f32 path

    # Case 1: tiny batch, default (bf16) path, single grid tile.
    # bf16 weights/activations give ~1e-2 relative error; tolerance set accordingly.
    x1 = jax.random.normal(kx1, (8, 67), jnp.float32)
    ref1 = ann_reference(x1, params)
    out1 = jax.block_until_ready(ann_forward(x1, prep_bf16))
    assert out1.shape == (8, 1), out1.shape
    assert jnp.allclose(out1, ref1, atol=5e-2, rtol=5e-2), float(jnp.max(jnp.abs(out1 - ref1)))

    # Case 2: multi-tile grid with padding (B=40, tile_b=16 -> 3 tiles, 8 pad rows), f32 path.
    x2 = jax.random.normal(kx2, (40, 67), jnp.float32)
    ref2 = ann_reference(x2, params)
    out2 = jax.block_until_ready(ann_forward(x2, prep_f32, tile_b=16))
    assert out2.shape == (40, 1), out2.shape
    assert jnp.allclose(out2, ref2, atol=1e-4, rtol=1e-4), float(jnp.max(jnp.abs(out2 - ref2)))

    # Case 3: default tile_b heuristic (>= 2 grid steps: tile_b=32 -> 2 tiles), bf16 path.
    out3 = jax.block_until_ready(ann_forward(x2, prep_bf16))
    assert out3.shape == (40, 1), out3.shape
    assert jnp.allclose(out3, ref2, atol=5e-2, rtol=5e-2), float(jnp.max(jnp.abs(out3 - ref2)))

    print("KERNEL_OK")
</pallas_src>

<mosaic_0001>
module attributes {stable_mosaic.version = 11 : i64} {
  func.func @ann_kernel(%arg0: i32, %arg1: memref<16x67xbf16, #tpu.memory_space<vmem>>, %arg2: memref<67x64xbf16, #tpu.memory_space<vmem>>, %arg3: memref<1x64xf32, #tpu.memory_space<vmem>>, %arg4: memref<64x64xbf16, #tpu.memory_space<vmem>>, %arg5: memref<1x64xf32, #tpu.memory_space<vmem>>, %arg6: memref<64x64xbf16, #tpu.memory_space<vmem>>, %arg7: memref<1x64xf32, #tpu.memory_space<vmem>>, %arg8: memref<64x32xbf16, #tpu.memory_space<vmem>>, %arg9: memref<1x32xf32, #tpu.memory_space<vmem>>, %arg10: memref<1x32xbf16, #tpu.memory_space<vmem>>, %arg11: memref<1x1xf32, #tpu.memory_space<vmem>>, %arg12: memref<16x1xf32, #tpu.memory_space<vmem>>) attributes {dimension_semantics = [#tpu.dimension_semantics<parallel>], iteration_bounds = array<i64: 1>, scalar_prefetch = 0 : i64, scratch_operands = 0 : i64, tpu.core_type = #tpu.core_type<tc>, window_params = [{transform_indices = @transform_0, window_bounds = array<i64: 16, 67>}, {pipeline_mode = #tpu.pipeline_mode<synchronous>, transform_indices = @transform_1, window_bounds = array<i64: 67, 64>}, {pipeline_mode = #tpu.pipeline_mode<synchronous>, transform_indices = @transform_2, window_bounds = array<i64: 1, 64>}, {pipeline_mode = #tpu.pipeline_mode<synchronous>, transform_indices = @transform_3, window_bounds = array<i64: 64, 64>}, {pipeline_mode = #tpu.pipeline_mode<synchronous>, transform_indices = @transform_4, window_bounds = array<i64: 1, 64>}, {pipeline_mode = #tpu.pipeline_mode<synchronous>, transform_indices = @transform_5, window_bounds = array<i64: 64, 64>}, {pipeline_mode = #tpu.pipeline_mode<synchronous>, transform_indices = @transform_6, window_bounds = array<i64: 1, 64>}, {pipeline_mode = #tpu.pipeline_mode<synchronous>, transform_indices = @transform_7, window_bounds = array<i64: 64, 32>}, {pipeline_mode = #tpu.pipeline_mode<synchronous>, transform_indices = @transform_8, window_bounds = array<i64: 1, 32>}, {pipeline_mode = #tpu.pipeline_mode<synchronous>, transform_indices = @transform_9, window_bounds = array<i64: 1, 32>}, {pipeline_mode = #tpu.pipeline_mode<synchronous>, transform_indices = @transform_10, window_bounds = array<i64: 1, 1>}, {transform_indices = @transform_11, window_bounds = array<i64: 16, 1>}]} {
    %c0 = arith.constant 0 : index
    %c0_0 = arith.constant 0 : index
    %0 = vector.load %arg1[%c0, %c0_0] : memref<16x67xbf16, #tpu.memory_space<vmem>>, vector<16x67xbf16>
    %c0_1 = arith.constant 0 : index
    %c0_2 = arith.constant 0 : index
    %1 = vector.load %arg2[%c0_1, %c0_2] : memref<67x64xbf16, #tpu.memory_space<vmem>>, vector<67x64xbf16>
    %cst = arith.constant dense<0.000000e+00> : vector<16x64xf32>
    %2 = tpu.matmul %0, %1, %cst {dimension_numbers = #tpu.dot_dimension_numbers<[1], [0], [0], [1], [0, 0, 1, 1], [], []>} : vector<16x67xbf16>, vector<67x64xbf16>, vector<16x64xf32> -> vector<16x64xf32>
    %c0_3 = arith.constant 0 : index
    %c0_4 = arith.constant 0 : index
    %3 = vector.load %arg3[%c0_3, %c0_4] : memref<1x64xf32, #tpu.memory_space<vmem>>, vector<1x64xf32>
    %4 = vector.broadcast %3 : vector<1x64xf32> to vector<16x64xf32>
    %5 = arith.addf %2, %4 : vector<16x64xf32>
    %cst_5 = arith.constant 0.000000e+00 : f32
    %6 = vector.broadcast %cst_5 : f32 to vector<16x64xf32>
    %7 = arith.maximumf %5, %6 : vector<16x64xf32>
    %8 = arith.truncf %7 : vector<16x64xf32> to vector<16x64xbf16>
    %c0_6 = arith.constant 0 : index
    %c0_7 = arith.constant 0 : index
    %9 = vector.load %arg4[%c0_6, %c0_7] : memref<64x64xbf16, #tpu.memory_space<vmem>>, vector<64x64xbf16>
    %cst_8 = arith.constant dense<0.000000e+00> : vector<16x64xf32>
    %10 = tpu.matmul %8, %9, %cst_8 {dimension_numbers = #tpu.dot_dimension_numbers<[1], [0], [0], [1], [0, 0, 1, 1], [], []>} : vector<16x64xbf16>, vector<64x64xbf16>, vector<16x64xf32> -> vector<16x64xf32>
    %c0_9 = arith.constant 0 : index
    %c0_10 = arith.constant 0 : index
    %11 = vector.load %arg5[%c0_9, %c0_10] : memref<1x64xf32, #tpu.memory_space<vmem>>, vector<1x64xf32>
    %12 = vector.broadcast %11 : vector<1x64xf32> to vector<16x64xf32>
    %13 = arith.addf %10, %12 : vector<16x64xf32>
    %cst_11 = arith.constant 0.000000e+00 : f32
    %14 = vector.broadcast %cst_11 : f32 to vector<16x64xf32>
    %15 = arith.maximumf %13, %14 : vector<16x64xf32>
    %16 = arith.truncf %15 : vector<16x64xf32> to vector<16x64xbf16>
    %c0_12 = arith.constant 0 : index
    %c0_13 = arith.constant 0 : index
    %17 = vector.load %arg6[%c0_12, %c0_13] : memref<64x64xbf16, #tpu.memory_space<vmem>>, vector<64x64xbf16>
    %cst_14 = arith.constant dense<0.000000e+00> : vector<16x64xf32>
    %18 = tpu.matmul %16, %17, %cst_14 {dimension_numbers = #tpu.dot_dimension_numbers<[1], [0], [0], [1], [0, 0, 1, 1], [], []>} : vector<16x64xbf16>, vector<64x64xbf16>, vector<16x64xf32> -> vector<16x64xf32>
    %c0_15 = arith.constant 0 : index
    %c0_16 = arith.constant 0 : index
    %19 = vector.load %arg7[%c0_15, %c0_16] : memref<1x64xf32, #tpu.memory_space<vmem>>, vector<1x64xf32>
    %20 = vector.broadcast %19 : vector<1x64xf32> to vector<16x64xf32>
    %21 = arith.addf %18, %20 : vector<16x64xf32>
    %cst_17 = arith.constant 0.000000e+00 : f32
    %22 = vector.broadcast %cst_17 : f32 to vector<16x64xf32>
    %23 = arith.maximumf %21, %22 : vector<16x64xf32>
    %24 = arith.truncf %23 : vector<16x64xf32> to vector<16x64xbf16>
    %c0_18 = arith.constant 0 : index
    %c0_19 = arith.constant 0 : index
    %25 = vector.load %arg8[%c0_18, %c0_19] : memref<64x32xbf16, #tpu.memory_space<vmem>>, vector<64x32xbf16>
    %cst_20 = arith.constant dense<0.000000e+00> : vector<16x32xf32>
    %26 = tpu.matmul %24, %25, %cst_20 {dimension_numbers = #tpu.dot_dimension_numbers<[1], [0], [0], [1], [0, 0, 1, 1], [], []>} : vector<16x64xbf16>, vector<64x32xbf16>, vector<16x32xf32> -> vector<16x32xf32>
    %c0_21 = arith.constant 0 : index
    %c0_22 = arith.constant 0 : index
    %27 = vector.load %arg9[%c0_21, %c0_22] : memref<1x32xf32, #tpu.memory_space<vmem>>, vector<1x32xf32>
    %28 = vector.broadcast %27 : vector<1x32xf32> to vector<16x32xf32>
    %29 = arith.addf %26, %28 : vector<16x32xf32>
    %cst_23 = arith.constant 0.000000e+00 : f32
    %30 = vector.broadcast %cst_23 : f32 to vector<16x32xf32>
    %31 = arith.maximumf %29, %30 : vector<16x32xf32>
    %c0_24 = arith.constant 0 : index
    %c0_25 = arith.constant 0 : index
    %32 = vector.load %arg10[%c0_24, %c0_25] : memref<1x32xbf16, #tpu.memory_space<vmem>>, vector<1x32xbf16>
    %33 = arith.extf %32 : vector<1x32xbf16> to vector<1x32xf32>
    %34 = vector.broadcast %33 : vector<1x32xf32> to vector<16x32xf32>
    %35 = arith.mulf %31, %34 : vector<16x32xf32>
    %cst_26 = arith.constant dense<0.000000e+00> : vector<16xf32>
    %36 = vector.multi_reduction <add>, %35, %cst_26 [1] : vector<16x32xf32> to vector<16xf32>
    %37 = vector.shape_cast %36 : vector<16xf32> to vector<16x1xf32>
    %c0_27 = arith.constant 0 : index
    %c0_28 = arith.constant 0 : index
    %38 = vector.load %arg11[%c0_27, %c0_28] : memref<1x1xf32, #tpu.memory_space<vmem>>, vector<1x1xf32>
    %39 = vector.broadcast %38 : vector<1x1xf32> to vector<16x1xf32>
    %40 = arith.addf %37, %39 : vector<16x1xf32>
    %c0_29 = arith.constant 0 : index
    %c0_30 = arith.constant 0 : index
    %41 = vector.load %arg12[%c0_29, %c0_30] : memref<16x1xf32, #tpu.memory_space<vmem>>, vector<16x1xf32>
    tpu.vector_store %arg12[%c0_29, %c0_30], %40 {strides = array<i32>} : memref<16x1xf32, #tpu.memory_space<vmem>>, vector<16x1xf32>,
    return
  }
  func.func @transform_0(%arg0: i32) -> (i32, i32) {
    %c0_i32 = arith.constant 0 : i32
    %c0_i32_0 = arith.constant 0 : i32
    return %arg0, %c0_i32 : i32, i32
  }
  func.func @transform_1(%arg0: i32) -> (i32, i32) {
    %c0_i32 = arith.constant 0 : i32
    %c0_i32_0 = arith.constant 0 : i32
    %c0_i32_1 = arith.constant 0 : i32
    return %c0_i32, %c0_i32_0 : i32, i32
  }
  func.func @transform_2(%arg0: i32) -> (i32, i32) {
    %c0_i32 = arith.constant 0 : i32
    %c0_i32_0 = arith.constant 0 : i32
    %c0_i32_1 = arith.constant 0 : i32
    return %c0_i32, %c0_i32_0 : i32, i32
  }
  func.func @transform_3(%arg0: i32) -> (i32, i32) {
    %c0_i32 = arith.constant 0 : i32
    %c0_i32_0 = arith.constant 0 : i32
    %c0_i32_1 = arith.constant 0 : i32
    return %c0_i32, %c0_i32_0 : i32, i32
  }
  func.func @transform_4(%arg0: i32) -> (i32, i32) {
    %c0_i32 = arith.constant 0 : i32
    %c0_i32_0 = arith.constant 0 : i32
    %c0_i32_1 = arith.constant 0 : i32
    return %c0_i32, %c0_i32_0 : i32, i32
  }
  func.func @transform_5(%arg0: i32) -> (i32, i32) {
    %c0_i32 = arith.constant 0 : i32
    %c0_i32_0 = arith.constant 0 : i32
    %c0_i32_1 = arith.constant 0 : i32
    return %c0_i32, %c0_i32_0 : i32, i32
  }
  func.func @transform_6(%arg0: i32) -> (i32, i32) {
    %c0_i32 = arith.constant 0 : i32
    %c0_i32_0 = arith.constant 0 : i32
    %c0_i32_1 = arith.constant 0 : i32
    return %c0_i32, %c0_i32_0 : i32, i32
  }
  func.func @transform_7(%arg0: i32) -> (i32, i32) {
    %c0_i32 = arith.constant 0 : i32
    %c0_i32_0 = arith.constant 0 : i32
    %c0_i32_1 = arith.constant 0 : i32
    return %c0_i32, %c0_i32_0 : i32, i32
  }
  func.func @transform_8(%arg0: i32) -> (i32, i32) {
    %c0_i32 = arith.constant 0 : i32
    %c0_i32_0 = arith.constant 0 : i32
    %c0_i32_1 = arith.constant 0 : i32
    return %c0_i32, %c0_i32_0 : i32, i32
  }
  func.func @transform_9(%arg0: i32) -> (i32, i32) {
    %c0_i32 = arith.constant 0 : i32
    %c0_i32_0 = arith.constant 0 : i32
    %c0_i32_1 = arith.constant 0 : i32
    return %c0_i32, %c0_i32_0 : i32, i32
  }
  func.func @transform_10(%arg0: i32) -> (i32, i32) {
    %c0_i32 = arith.constant 0 : i32
    %c0_i32_0 = arith.constant 0 : i32
    %c0_i32_1 = arith.constant 0 : i32
    return %c0_i32, %c0_i32_0 : i32, i32
  }
  func.func @transform_11(%arg0: i32) -> (i32, i32) {
    %c0_i32 = arith.constant 0 : i32
    %c0_i32_0 = arith.constant 0 : i32
    return %arg0, %c0_i32 : i32, i32
  }
}

</mosaic_0001>

<llo_original>
// kernel: tpu_custom_call.1
$region0: #{tpu_custom_call.1}
  #allocation0 [shape = 'u32[]', space=smem, size = 0x4, offset = 0x4, fixed_abs, tag = 'smem constant byte address 0x4 - core index']
  #allocation1 [shape = 'u32[72,128]{1,0:T(1,128)}', space=vmem, size = 0x9000, scoped, tag = 'internal scratch']
  #allocation2 [shape = 'f32[1,1]{1,0:T(1,128)S(1)}', space=vmem, size = 0x200, scoped, tag = 'scoped memory for tpu_custom_call.1']
  %s0 = inlined_call_operand.vmem [shape: bf16[16,67], index: 0, kind: input, shape index: {}]
  %s1 = inlined_call_operand.vmem [shape: bf16[67,64], index: 1, kind: input, shape index: {}]
  %s2 = inlined_call_operand.vmem [shape: f32[1,64], index: 2, kind: input, shape index: {}]
  %s3 = inlined_call_operand.vmem [shape: bf16[64,64], index: 3, kind: input, shape index: {}]
  %s4 = inlined_call_operand.vmem [shape: f32[1,64], index: 4, kind: input, shape index: {}]
  %s5 = inlined_call_operand.vmem [shape: bf16[64,64], index: 5, kind: input, shape index: {}]
  %s6 = inlined_call_operand.vmem [shape: f32[1,64], index: 6, kind: input, shape index: {}]
  %s7 = inlined_call_operand.vmem [shape: bf16[64,32], index: 7, kind: input, shape index: {}]
  %s8 = inlined_call_operand.vmem [shape: f32[1,32], index: 8, kind: input, shape index: {}]
  %s9 = inlined_call_operand.vmem [shape: bf16[1,32], index: 9, kind: input, shape index: {}]
  %s10 = inlined_call_operand.<no memory space> [shape: f32[1,1], index: 10, kind: input, shape index: {}]
  %s11 = inlined_call_operand.vmem [shape: f32[16,1], index: 11, kind: output, shape index: {}]
  %s12 = sld [smem:[#allocation0]]
  $region54: #{tpu_custom_call.1} parent=0
    _
  %s14 = ssub.s32 1, %s12
  %s15 = scalar_select 0, %s14, %s12
  %v16 = vstv %s10
  %17 = vst [vmem:[#allocation2] sm:$0x1] %v16
  // Predicated region
  $region2: #{tpu_custom_call.1} parent=0 // pred_check
    _
  $region3: #{tpu_custom_call.1} parent=0 // pred_check_branch
    %19 = sbr.rel (0) target = $region5
  $region4: #{tpu_custom_call.1} parent=0 // pred_region
    _
  $region5: #{tpu_custom_call.1} parent=0 // pred_fallthru
    _
  // Predicated region
  $region6: #{tpu_custom_call.1} parent=0 // pred_check
    _
  $region7: #{tpu_custom_call.1} parent=0 // pred_check_branch
    %21 = sbr.rel (0) target = $region9
  $region8: #{tpu_custom_call.1} parent=0 // pred_region
    _
  $region9: #{tpu_custom_call.1} parent=0 // pred_fallthru
    _
  // Predicated region
  $region10: #{tpu_custom_call.1} parent=0 // pred_check
    _
  $region11: #{tpu_custom_call.1} parent=0 // pred_check_branch
    %23 = sbr.rel (0) target = $region13
  $region12: #{tpu_custom_call.1} parent=0 // pred_region
    _
  $region13: #{tpu_custom_call.1} parent=0 // pred_fallthru
    _
  // Predicated region
  $region14: #{tpu_custom_call.1} parent=0 // pred_check
    _
  $region15: #{tpu_custom_call.1} parent=0 // pred_check_branch
    %25 = sbr.rel (0) target = $region17
  $region16: #{tpu_custom_call.1} parent=0 // pred_region
    _
  $region17: #{tpu_custom_call.1} parent=0 // pred_fallthru
    _
  // Predicated region
  $region18: #{tpu_custom_call.1} parent=0 // pred_check
    _
  $region19: #{tpu_custom_call.1} parent=0 // pred_check_branch
    %27 = sbr.rel (0) target = $region21
  $region20: #{tpu_custom_call.1} parent=0 // pred_region
    _
  $region21: #{tpu_custom_call.1} parent=0 // pred_fallthru
    _
  // Predicated region
  $region22: #{tpu_custom_call.1} parent=0 // pred_check
    _
  $region23: #{tpu_custom_call.1} parent=0 // pred_check_branch
    %29 = sbr.rel (0) target = $region25
  $region24: #{tpu_custom_call.1} parent=0 // pred_region
    _
  $region25: #{tpu_custom_call.1} parent=0 // pred_fallthru
    _
  // Predicated region
  $region26: #{tpu_custom_call.1} parent=0 // pred_check
    _
  $region27: #{tpu_custom_call.1} parent=0 // pred_check_branch
    %31 = sbr.rel (0) target = $region29
  $region28: #{tpu_custom_call.1} parent=0 // pred_region
    _
  $region29: #{tpu_custom_call.1} parent=0 // pred_fallthru
    _
  // Predicated region
  $region30: #{tpu_custom_call.1} parent=0 // pred_check
    _
  $region31: #{tpu_custom_call.1} parent=0 // pred_check_branch
    %33 = sbr.rel (0) target = $region33
  $region32: #{tpu_custom_call.1} parent=0 // pred_region
    _
  $region33: #{tpu_custom_call.1} parent=0 // pred_fallthru
    _
  // Predicated region
  $region34: #{tpu_custom_call.1} parent=0 // pred_check
    _
  $region35: #{tpu_custom_call.1} parent=0 // pred_check_branch
    %35 = sbr.rel (0) target = $region37
  $region36: #{tpu_custom_call.1} parent=0 // pred_region
    _
  $region37: #{tpu_custom_call.1} parent=0 // pred_fallthru
    _
  // Predicated region
  $region38: #{tpu_custom_call.1} parent=0 // pred_check
    _
  $region39: #{tpu_custom_call.1} parent=0 // pred_check_branch
    %37 = sbr.rel (0) target = $region41
  $region40: #{tpu_custom_call.1} parent=0 // pred_region
    _
  $region41: #{tpu_custom_call.1} parent=0 // pred_fallthru
    _
  // Predicated region
  $region42: #{tpu_custom_call.1} parent=0 // pred_check
    _
  $region43: #{tpu_custom_call.1} parent=0 // pred_check_branch
    %39 = sbr.rel (0) target = $region45
  $region44: #{tpu_custom_call.1} parent=0 // pred_region
    _
  $region45: #{tpu_custom_call.1} parent=0 // pred_fallthru
    _
  %v41 = vld [vmem:[%s0] sm:$0xf]
  %v42 = vld [vmem:[%s0 + $0x4] sm:$0xf]
  %v43 = vld [vmem:[%s1] sm:$0xf]
  %v44 = vld [vmem:[%s1 + $0x4] sm:$0xf]
  %v45 = vld [vmem:[%s1 + $0x8] sm:$0xf]
  %v46 = vld [vmem:[%s1 + $0xc] sm:$0xf]
  %v47 = vld [vmem:[%s1 + $0x10] sm:$0xf]
  %v48 = vld [vmem:[%s1 + $0x14] sm:$0xf]
  %v49 = vld [vmem:[%s1 + $0x18] sm:$0xf]
  %v50 = vld [vmem:[%s1 + $0x1c] sm:$0xf]
  %v51 = vld [vmem:[%s1 + $0x20] sm:$0x3]
  %v52 = vld [vmem:[%s2] sm:$0x1]
  %v54 = vperm.slane %v52, 0
  %v58 = vunpack.c.l.b16 %v41
  %v59 = vunpack.c.l.b16 %v42
  %v60 = vpack.c.b16 %v59, %v58
  %v70 = vunpack.c.l.b16 %v43
  %v71 = vunpack.c.l.b16 %v44
  %v72 = vunpack.c.l.b16 %v45
  %v73 = vunpack.c.l.b16 %v46
  %v74 = vunpack.c.l.b16 %v47
  %v75 = vunpack.c.l.b16 %v48
  %v76 = vunpack.c.l.b16 %v49
  %v77 = vunpack.c.l.b16 %v50
  %v78 = vunpack.c.l.b16 %v51
  %v79 = vpack.c.b16 %v71, %v70
  %v80 = vpack.c.b16 %v73, %v72
  %v81 = vpack.c.b16 %v75, %v74
  %v82 = vpack.c.b16 %v77, %v76
  %v83 = vpack.c.b16 %v78, %v78
  %vm88 = vcmask 547840
  %v90 = vsel %vm88, %v60, 0
  %vm92 = vcmask 1040384
  %vm93 = vcmask 1041408
  %v94 = vsel %vm92, 4294967295, 65535
  %v95 = vsel %vm93, %v94, 0
  %v97 = vand.u32 %v83, %v95
  %99 = vmatpush.bf16.msra.mxu0 0
  %100 = vmatpush.bf16.msra.mxu0 0
  %101 = vmatpush.bf16.msra.mxu0 0
  %102 = vmatpush.bf16.msra.mxu0 %v97
  %103 = vmatpush.bf16.msra.mxu0 %v82
  %104 = vmatpush.bf16.msra.mxu0 %v81
  %105 = vmatpush.bf16.msra.mxu0 %v80
  %106 = vmatpush.bf16.msra.mxu0 %v79
  %107 = vmatmul.bf16.gmra.mxu0 %v90
  %v108 = vpop.f32.mrf.mxu0
  %v109 = vadd.f32 %v54, %v108
  %v110 = vpop.f32.mrf.mxu0
  %v111 = vadd.f32 %v54, %v110
  %112 = vdwg.mxu0
  %v113 = vmax.f32 %v109, 0.0
  %v114 = vmax.f32 %v111, 0.0
  %v115 = vpack.c.bf16 %v114, %v113
  %v116 = vld [vmem:[%s3] sm:$0xf]
  %v117 = vld [vmem:[%s3 + $0x4] sm:$0xf]
  %v118 = vld [vmem:[%s3 + $0x8] sm:$0xf]
  %v119 = vld [vmem:[%s3 + $0xc] sm:$0xf]
  %v120 = vld [vmem:[%s3 + $0x10] sm:$0xf]
  %v121 = vld [vmem:[%s3 + $0x14] sm:$0xf]
  %v122 = vld [vmem:[%s3 + $0x18] sm:$0xf]
  %v123 = vld [vmem:[%s3 + $0x1c] sm:$0xf]
  %v124 = vld [vmem:[%s4] sm:$0x1]
  %v126 = vperm.slane %v124, 0
  %v136 = vunpack.c.l.b16 %v116
  %v137 = vunpack.c.l.b16 %v117
  %v138 = vunpack.c.l.b16 %v118
  %v139 = vunpack.c.l.b16 %v119
  %v140 = vunpack.c.l.b16 %v120
  %v141 = vunpack.c.l.b16 %v121
  %v142 = vunpack.c.l.b16 %v122
  %v143 = vunpack.c.l.b16 %v123
  %v144 = vpack.c.b16 %v137, %v136
  %v145 = vpack.c.b16 %v139, %v138
  %v146 = vpack.c.b16 %v141, %v140
  %v147 = vpack.c.b16 %v143, %v142
  %vm152 = vcmask 523264
  %v154 = vsel %vm152, %v115, 0
  %156 = vmatpush.bf16.msra.mxu0 0
  %157 = vmatpush.bf16.msra.mxu0 0
  %158 = vmatpush.bf16.msra.mxu0 0
  %159 = vmatpush.bf16.msra.mxu0 0
  %160 = vmatpush.bf16.msra.mxu0 %v147
  %161 = vmatpush.bf16.msra.mxu0 %v146
  %162 = vmatpush.bf16.msra.mxu0 %v145
  %163 = vmatpush.bf16.msra.mxu0 %v144
  %164 = vmatmul.bf16.gmra.mxu0 %v154
  %v165 = vpop.f32.mrf.mxu0
  %v166 = vadd.f32 %v126, %v165
  %v167 = vpop.f32.mrf.mxu0
  %v168 = vadd.f32 %v126, %v167
  %169 = vdwg.mxu0
  %v170 = vmax.f32 %v166, 0.0
  %v171 = vmax.f32 %v168, 0.0
  %v172 = vpack.c.bf16 %v171, %v170
  %v173 = vld [vmem:[%s5] sm:$0xf]
  %v174 = vld [vmem:[%s5 + $0x4] sm:$0xf]
  %v175 = vld [vmem:[%s5 + $0x8] sm:$0xf]
  %v176 = vld [vmem:[%s5 + $0xc] sm:$0xf]
  %v177 = vld [vmem:[%s5 + $0x10] sm:$0xf]
  %v178 = vld [vmem:[%s5 + $0x14] sm:$0xf]
  %v179 = vld [vmem:[%s5 + $0x18] sm:$0xf]
  %v180 = vld [vmem:[%s5 + $0x1c] sm:$0xf]
  %v181 = vld [vmem:[%s6] sm:$0x1]
  %v183 = vperm.slane %v181, 0
  %v193 = vunpack.c.l.b16 %v173
  %v194 = vunpack.c.l.b16 %v174
  %v195 = vunpack.c.l.b16 %v175
  %v196 = vunpack.c.l.b16 %v176
  %v197 = vunpack.c.l.b16 %v177
  %v198 = vunpack.c.l.b16 %v178
  %v199 = vunpack.c.l.b16 %v179
  %v200 = vunpack.c.l.b16 %v180
  %v201 = vpack.c.b16 %v194, %v193
  %v202 = vpack.c.b16 %v196, %v195
  %v203 = vpack.c.b16 %v198, %v197
  %v204 = vpack.c.b16 %v200, %v199
  %v210 = vsel %vm152, %v172, 0
  %212 = vmatpush.bf16.msra.mxu0 0
  %213 = vmatpush.bf16.msra.mxu0 0
  %214 = vmatpush.bf16.msra.mxu0 0
  %215 = vmatpush.bf16.msra.mxu0 0
  %216 = vmatpush.bf16.msra.mxu0 %v204
  %217 = vmatpush.bf16.msra.mxu0 %v203
  %218 = vmatpush.bf16.msra.mxu0 %v202
  %219 = vmatpush.bf16.msra.mxu0 %v201
  %220 = vmatmul.bf16.gmra.mxu0 %v210
  %v221 = vpop.f32.mrf.mxu0
  %v222 = vadd.f32 %v183, %v221
  %v223 = vpop.f32.mrf.mxu0
  %v224 = vadd.f32 %v183, %v223
  %225 = vdwg.mxu0
  %v226 = vmax.f32 %v222, 0.0
  %v227 = vmax.f32 %v224, 0.0
  %v228 = vpack.c.bf16 %v227, %v226
  %v229 = vld [vmem:[%s7] sm:$0xf]
  %v230 = vld [vmem:[%s7 + $0x4] sm:$0xf]
  %v231 = vld [vmem:[%s7 + $0x8] sm:$0xf]
  %v232 = vld [vmem:[%s7 + $0xc] sm:$0xf]
  %v233 = vld [vmem:[%s7 + $0x10] sm:$0xf]
  %v234 = vld [vmem:[%s7 + $0x14] sm:$0xf]
  %v235 = vld [vmem:[%s7 + $0x18] sm:$0xf]
  %v236 = vld [vmem:[%s7 + $0x1c] sm:$0xf]
  %v237 = vld [vmem:[%s8] sm:$0x1]
  %v239 = vperm.slane %v237, 0
  %v249 = vunpack.c.l.b16 %v229
  %v250 = vunpack.c.l.b16 %v230
  %v251 = vunpack.c.l.b16 %v231
  %v252 = vunpack.c.l.b16 %v232
  %v253 = vunpack.c.l.b16 %v233
  %v254 = vunpack.c.l.b16 %v234
  %v255 = vunpack.c.l.b16 %v235
  %v256 = vunpack.c.l.b16 %v236
  %v257 = vpack.c.b16 %v250, %v249
  %v258 = vpack.c.b16 %v252, %v251
  %v259 = vpack.c.b16 %v254, %v253
  %v260 = vpack.c.b16 %v256, %v255
  %v266 = vsel %vm152, %v228, 0
  %268 = vmatpush.bf16.msra.mxu0 0
  %269 = vmatpush.bf16.msra.mxu0 0
  %270 = vmatpush.bf16.msra.mxu0 0
  %271 = vmatpush.bf16.msra.mxu0 0
  %272 = vmatpush.bf16.msra.mxu0 %v260
  %273 = vmatpush.bf16.msra.mxu0 %v259
  %274 = vmatpush.bf16.msra.mxu0 %v258
  %275 = vmatpush.bf16.msra.mxu0 %v257
  %276 = vmatmul.bf16.gmra.mxu0 %v266
  %v277 = vpop.f32.mrf.mxu0
  %v278 = vadd.f32 %v239, %v277
  %v279 = vpop.f32.mrf.mxu0
  %v280 = vadd.f32 %v239, %v279
  %281 = vdwg.mxu0
  %v282 = vmax.f32 %v278, 0.0
  %v283 = vmax.f32 %v280, 0.0
  %v284 = vld [vmem:[%s9] sm:$0x1]
  %v285 = vunpack.c.l.bf16 %v284
  %v286 = vperm.slane %v285, 0
  %v287 = vmul.f32 %v282, %v286
  %v288 = vmul.f32 %v283, %v286
  %vm289 = vcmask 261120
  %v290 = vsel %vm289, %v287, 0.0
  %291 = vadd.xlane.f32.xlu0 %v290
  %v292 = vpop.xlane.xlu0 %291
  %v293 = vsel %vm289, %v288, 0.0
  %294 = vadd.xlane.f32.xlu0 %v293
  %v295 = vpop.xlane.xlu0 %294
  %v296 = vld [vmem:[#allocation2] sm:$0x1]
  %v298 = vperm.slane %v296, 0
  %v300 = vadd.f32 %v292, %v298
  %v301 = vadd.f32 %v295, %v298
  %vm302 = vcmask 7168
  %303 = vst.msk [vmem:[%s11] sm:$0xff] %vm302, %v300
  %304 = vst.msk [vmem:[%s11 + $0x8] sm:$0xff] %vm302, %v301
  // Predicated region
  $region46: #{tpu_custom_call.1} parent=0 // pred_check
    _
  $region47: #{tpu_custom_call.1} parent=0 // pred_check_branch
    %306 = sbr.rel (0) target = $region49
  $region48: #{tpu_custom_call.1} parent=0 // pred_region
    _
  $region49: #{tpu_custom_call.1} parent=0 // pred_fallthru
    _
  // Predicated region
  $region50: #{tpu_custom_call.1} parent=0 // pred_check
    _
  $region51: #{tpu_custom_call.1} parent=0 // pred_check_branch
    %308 = sbr.rel (0) target = $region53
  $region52: #{tpu_custom_call.1} parent=0 // pred_region
    _
  $region53: #{tpu_custom_call.1} parent=0 // pred_fallthru
    _

</llo_original>
